<compile_context>
chip_gen: v6e
topology: v6e:2x2x1
jax: 0.10.0
libtpu: 0.0.40
codegen_flags: <defaults>
</compile_context>

<pallas_src>
import math
import numpy as np

import jax
import jax.numpy as jnp
from jax import lax
from jax.experimental import pallas as pl
from jax.experimental.pallas import tpu as pltpu

# TODO(synk): re-derive per generation (v7x has only 64 MiB physical VMEM);
# blocks here are sized so actual usage stays a few MiB per grid step.
_VMEM_LIMIT = 64 * 1024 * 1024


def _pick_tile(n, pref):
    """Largest power-of-two divisor of n that is <= pref (falls back to n)."""
    t = pref
    while t >= 8:
        if n % t == 0:
            return t
        t //= 2
    return n


# --------------------------------------------------------------------------
# Kernel A: sparsity measure M without materializing S in HBM.
#   M[b, h, q] = max_{sampled j} (Q_q . K_j) - (sum over samples (Q_q . K_j)) / L_K
# samp_count[q, j] = multiplicity of key j among the U_part random samples of
# query row q (shared across batch/head, exactly like torch.randint in the
# reference, which draws one (L_Q, sample_k) index table for all b, h).
# --------------------------------------------------------------------------
def _sparsity_measure(Q, K, samp_count):
    B, H, L_Q, D = Q.shape
    L_K = K.shape[2]
    tq = _pick_tile(L_Q, 128)          # (tq, L_K) score tile lives in VMEM only
    nq = L_Q // tq

    def kernel(q_ref, k_ref, cnt_ref, m_ref):
        s = lax.dot_general(q_ref[...], k_ref[...],
                            dimension_numbers=(((1,), (1,)), ((), ())),
                            preferred_element_type=jnp.float32)          # (tq, L_K)
        cnt = cnt_ref[...].astype(jnp.float32)                            # (tq, L_K)
        s_max = jnp.max(jnp.where(cnt > 0.0, s, -jnp.inf), axis=-1, keepdims=True)
        s_sum = jnp.sum(s * cnt, axis=-1, keepdims=True)
        m_ref[...] = s_max - s_sum * (1.0 / L_K)

    M = pl.pallas_call(
        kernel,
        out_shape=jax.ShapeDtypeStruct((B, H, L_Q, 1), jnp.float32),
        grid_spec=pltpu.PrefetchScalarGridSpec(
            num_scalar_prefetch=0,
            # q innermost: the K block index is invariant across q, so the
            # pipeline keeps K resident in VMEM for a whole (b, h).
            grid=(B, H, nq),
            in_specs=[
                pl.BlockSpec((None, None, tq, D), lambda b, h, q: (b, h, q, 0)),
                pl.BlockSpec((None, None, L_K, D), lambda b, h, q: (b, h, 0, 0)),
                pl.BlockSpec((tq, L_K), lambda b, h, q: (q, 0)),
            ],
            out_specs=pl.BlockSpec((None, None, tq, 1),
                                   lambda b, h, q: (b, h, q, 0)),
        ),
        compiler_params=pltpu.CompilerParams(
            dimension_semantics=("parallel", "parallel", "parallel"),
            vmem_limit_bytes=_VMEM_LIMIT),
    )(Q, K, samp_count)
    return M[..., 0]                                                      # (B, H, L_Q)


# --------------------------------------------------------------------------
# Kernel B: scores_top = Q_reduce @ K^T (fused, never gathered from HBM),
#           ProbMask + f32 softmax + attn @ V, blocked-cumsum (or mean)
#           initial context, and scatter of the u updated rows.
# --------------------------------------------------------------------------
def _context_update(Q_reduce, K, V, M_top, L_Q, scale_val, mask_flag,
                    output_attention):
    B, H, u, D = Q_reduce.shape
    L_K = K.shape[2]
    L_V = V.shape[2]
    ctx_dtype = V.dtype

    idx_col = M_top[..., None]        # (B, H, u, 1)  per-row causal bound
    idx_row = M_top[:, :, None, :]    # (B, H, 1, u)  scatter destinations

    # Blocked cumsum tile: (T, T) tril + running carry instead of the
    # reference's (L_Q, L_V) tril matmul (O(L*T*D) work, (T, T) intermediate).
    ctx_tile = _pick_tile(L_Q, 256)
    n_ctx_tiles = L_Q // ctx_tile

    def kernel(qr_ref, k_ref, v_ref, idxc_ref, idxr_ref, ctx_ref, *attn_refs):
        # scores_top = (Q_reduce @ K^T) * scale   (f32 accumulation on the MXU)
        scores = lax.dot_general(qr_ref[...], k_ref[...],
                                 dimension_numbers=(((1,), (1,)), ((), ())),
                                 preferred_element_type=jnp.float32) * scale_val
        if mask_flag:
            # ProbMask: mask[t, j] = j > index[t]
            col = lax.broadcasted_iota(jnp.int32, (u, L_K), 1)
            scores = jnp.where(col > idxc_ref[...], -jnp.inf, scores)

        # softmax over keys in f32 (row t always keeps column index[t], so no
        # fully-masked rows / NaNs).  Reciprocal goes to the EUP slot.
        m = jnp.max(scores, axis=-1, keepdims=True)
        e = jnp.exp(scores - m)
        attn = e * pl.reciprocal(jnp.sum(e, axis=-1, keepdims=True),
                                 approx=True)                            # (u, L_K)
        if output_attention:
            attn_refs[0][...] = attn

        v = v_ref[...]                                                    # (L_V, D)
        out = jnp.dot(attn.astype(v.dtype), v,
                      preferred_element_type=jnp.float32)                 # (u, D) f32

        idx_row_v = idxr_ref[...]                                         # (1, u)
        # Hoisted loop-invariant broadcasts / iotas.
        rows0 = lax.broadcasted_iota(jnp.int32, (ctx_tile, u), 0)         # (T, u)
        if mask_flag:
            ri = lax.broadcasted_iota(jnp.int32, (ctx_tile, ctx_tile), 0)
            ci = lax.broadcasted_iota(jnp.int32, (ctx_tile, ctx_tile), 1)
            tril = (ri >= ci).astype(jnp.float32)                         # (T, T)
            carry = jnp.zeros((1, D), jnp.float32)
        else:
            v_mean = jnp.mean(v.astype(jnp.float32), axis=0, keepdims=True)

        for t in range(n_ctx_tiles):                                      # static unroll
            lo = t * ctx_tile
            if mask_flag:
                v_t = v_ref[pl.ds(lo, ctx_tile), :].astype(jnp.float32)
                ctx0 = jnp.dot(tril, v_t, preferred_element_type=jnp.float32) + carry
                carry = carry + jnp.sum(v_t, axis=0, keepdims=True)
            else:
                ctx0 = jnp.zeros((ctx_tile, D), jnp.float32) + v_mean
            # scatter context[index[t]] = out[t] as a one-hot matmul (stays
            # vectorized on the MXU; lax.top_k indices are unique per (b, h)).
            onehot = ((rows0 + lo) == idx_row_v).astype(jnp.float32)      # (T, u)
            hit = jnp.sum(onehot, axis=-1, keepdims=True)
            upd = jnp.dot(onehot, out, preferred_element_type=jnp.float32)
            ctx_ref[pl.ds(lo, ctx_tile), :] = (
                ctx0 * (1.0 - hit) + upd).astype(ctx_ref.dtype)

    ctx_sds = jax.ShapeDtypeStruct((B, H, L_Q, D), ctx_dtype)
    ctx_spec = pl.BlockSpec((None, None, L_Q, D), lambda b, h: (b, h, 0, 0))
    if output_attention:
        out_shape = (ctx_sds, jax.ShapeDtypeStruct((B, H, u, L_K), jnp.float32))
        out_specs = (ctx_spec,
                     pl.BlockSpec((None, None, u, L_K), lambda b, h: (b, h, 0, 0)))
    else:                          # no dead (B, H, u, L_K) HBM writeback
        out_shape = ctx_sds
        out_specs = ctx_spec

    res = pl.pallas_call(
        kernel,
        out_shape=out_shape,
        grid_spec=pltpu.PrefetchScalarGridSpec(
            num_scalar_prefetch=0,
            grid=(B, H),
            in_specs=[
                pl.BlockSpec((None, None, u, D), lambda b, h: (b, h, 0, 0)),
                pl.BlockSpec((None, None, L_K, D), lambda b, h: (b, h, 0, 0)),
                pl.BlockSpec((None, None, L_V, D), lambda b, h: (b, h, 0, 0)),
                pl.BlockSpec((None, None, u, 1), lambda b, h: (b, h, 0, 0)),
                pl.BlockSpec((None, None, 1, u), lambda b, h: (b, h, 0, 0)),
            ],
            out_specs=out_specs,
        ),
        compiler_params=pltpu.CompilerParams(
            dimension_semantics=("parallel", "parallel"),
            vmem_limit_bytes=_VMEM_LIMIT),
    )(Q_reduce, K, V, idx_col, idx_row)

    if output_attention:
        return res[0], res[1]
    return res, None


# --------------------------------------------------------------------------
# ProbAttention forward (module defaults: mask_flag=True, factor=5, scale=None,
# output_attention=False).
# --------------------------------------------------------------------------
def prob_attention(queries, keys, values, attn_mask=None, *,
                   mask_flag=True, factor=5, scale=None,
                   output_attention=False, sample_key=None):
    B, L_Q, H, D = queries.shape
    _, L_K, _, _ = keys.shape
    _, L_V, _, _ = values.shape

    # No dtype upcast: bf16 inputs stay bf16; matmuls accumulate in f32.
    Q = jnp.transpose(queries, (0, 2, 1, 3))      # (B, H, L_Q, D)
    K = jnp.transpose(keys, (0, 2, 1, 3))         # (B, H, L_K, D)
    V = jnp.transpose(values, (0, 2, 1, 3))       # (B, H, L_V, D)

    U_part = min(int(factor * math.ceil(math.log(L_K))), L_K)
    u = min(int(factor * math.ceil(math.log(L_Q))), L_Q)

    # TODO(synk): torch.randint sampling cannot be bit-matched; a JAX PRNG key
    # is used instead (the reference module is random here anyway).
    if sample_key is None:
        sample_key = jax.random.PRNGKey(0)
    index_sample = jax.random.randint(sample_key, (L_Q, U_part), 0, L_K)
    # Multiplicity of each key among the samples of each query row (shared
    # across b, h).  bf16 holds small integers exactly up to 256 and keeps the
    # HBM traffic of the sampling stage low.
    cnt_dtype = jnp.bfloat16 if U_part <= 256 else jnp.float32
    samp_count = jnp.zeros((L_Q, L_K), jnp.float32).at[
        jnp.arange(L_Q)[:, None], index_sample].add(1.0).astype(cnt_dtype)

    # Sparsity measure + top-u selection; the full score matrix never hits HBM.
    M = _sparsity_measure(Q, K, samp_count)                    # (B, H, L_Q) f32
    _, M_top = lax.top_k(M, u)                                 # (B, H, u)
    M_top = M_top.astype(jnp.int32)

    # Gather only the u selected query rows (tiny, data dependent -> JAX).
    Q_reduce = jnp.take_along_axis(Q, M_top[..., None], axis=2)  # (B, H, u, D)

    scale_val = float(scale) if scale is not None else 1.0 / math.sqrt(D)
    if mask_flag:
        assert L_Q == L_V, "mask_flag=True requires L_Q == L_V (cumsum context)"

    context, attn = _context_update(Q_reduce, K, V, M_top, L_Q,
                                    scale_val, mask_flag, output_attention)
    context = jnp.transpose(context, (0, 2, 1, 3))             # (B, L_Q, H, D)

    # TODO(synk): attention_dropout is declared in the reference module but is
    # never applied in its forward(), so it is intentionally omitted here.
    if output_attention:
        attns = jnp.full((B, H, L_V, L_V), 1.0 / L_V, dtype=attn.dtype)
        b_idx = jnp.arange(B)[:, None, None]
        h_idx = jnp.arange(H)[None, :, None]
        attns = attns.at[b_idx, h_idx, M_top, :].set(attn)
        return context, attns
    return context, None


# --------------------------------------------------------------------------
if __name__ == "__main__":
    key = jax.random.PRNGKey(0)
    kq, kk, kv, ks = jax.random.split(key, 4)

    B, L, H, D = 2, 8, 4, 32
    queries = jax.random.normal(kq, (B, L, H, D), jnp.float32)
    keys = jax.random.normal(kk, (B, L, H, D), jnp.float32)
    values = jax.random.normal(kv, (B, L, H, D), jnp.float32)

    context, _ = prob_attention(queries, keys, values, None,
                                mask_flag=True, factor=5, scale=None,
                                output_attention=False, sample_key=ks)
    context = jax.block_until_ready(context)
    assert context.shape == (B, L, H, D)
    assert bool(jnp.all(jnp.isfinite(context)))

    # At these sizes u == L_Q and U_part == L_K, so ProbAttention degenerates
    # to full (causal) attention -> check against a plain-JAX reference.
    Qr = jnp.transpose(queries, (0, 2, 1, 3))
    Kr = jnp.transpose(keys, (0, 2, 1, 3))
    Vr = jnp.transpose(values, (0, 2, 1, 3))
    Sr = jnp.einsum("bhqd,bhkd->bhqk", Qr, Kr) / math.sqrt(D)
    causal = jnp.tril(jnp.ones((L, L), dtype=bool))
    Sc = jnp.where(causal[None, None], Sr, -jnp.inf)
    Ar = jax.nn.softmax(Sc, axis=-1)
    ctx_ref = jnp.transpose(jnp.einsum("bhqk,bhkd->bhqd", Ar, Vr), (0, 2, 1, 3))
    assert np.allclose(np.asarray(context), np.asarray(ctx_ref),
                       rtol=2e-2, atol=2e-2)

    # output_attention=True variant (attn output allocated only in this path).
    ctx2, attns = prob_attention(queries, keys, values, None,
                                 mask_flag=True, factor=5, scale=None,
                                 output_attention=True, sample_key=ks)
    ctx2 = jax.block_until_ready(ctx2)
    assert attns.shape == (B, H, L, L)
    assert np.allclose(np.asarray(attns), np.asarray(Ar), rtol=2e-2, atol=2e-2)

    # mask_flag=False path (mean initial context, no causal mask).
    ctx3, _ = prob_attention(queries, keys, values, None,
                             mask_flag=False, factor=5, scale=None,
                             output_attention=False, sample_key=ks)
    ctx3 = jax.block_until_ready(ctx3)
    An = jax.nn.softmax(Sr, axis=-1)
    ctx3_ref = jnp.transpose(jnp.einsum("bhqk,bhkd->bhqd", An, Vr), (0, 2, 1, 3))
    assert np.allclose(np.asarray(ctx3), np.asarray(ctx3_ref),
                       rtol=2e-2, atol=2e-2)

    print("KERNEL_OK")
</pallas_src>

<mosaic_0001>
module attributes {stable_mosaic.version = 11 : i64} {
  func.func @kernel(%arg0: i32, %arg1: i32, %arg2: i32, %arg3: memref<1x1x8x32xf32, #tpu.memory_space<vmem>>, %arg4: memref<1x1x8x32xf32, #tpu.memory_space<vmem>>, %arg5: memref<8x8xbf16, #tpu.memory_space<vmem>>, %arg6: memref<1x1x8x1xf32, #tpu.memory_space<vmem>>) attributes {dimension_semantics = [#tpu.dimension_semantics<parallel>, #tpu.dimension_semantics<parallel>, #tpu.dimension_semantics<parallel>], iteration_bounds = array<i64: 2, 4, 1>, scalar_prefetch = 0 : i64, scratch_operands = 0 : i64, tpu.core_type = #tpu.core_type<tc>, window_params = [{transform_indices = @transform_0, window_bounds = array<i64: 1, 1, 8, 32>}, {transform_indices = @transform_1, window_bounds = array<i64: 1, 1, 8, 32>}, {transform_indices = @transform_2, window_bounds = array<i64: 8, 8>}, {transform_indices = @transform_3, window_bounds = array<i64: 1, 1, 8, 1>}]} {
    %c0 = arith.constant 0 : index
    %c0_0 = arith.constant 0 : index
    %c0_1 = arith.constant 0 : index
    %c0_2 = arith.constant 0 : index
    %0 = vector.load %arg3[%c0, %c0_0, %c0_1, %c0_2] : memref<1x1x8x32xf32, #tpu.memory_space<vmem>>, vector<1x1x8x32xf32>
    %1 = vector.shape_cast %0 : vector<1x1x8x32xf32> to vector<8x32xf32>
    %c0_3 = arith.constant 0 : index
    %c0_4 = arith.constant 0 : index
    %c0_5 = arith.constant 0 : index
    %c0_6 = arith.constant 0 : index
    %2 = vector.load %arg4[%c0_3, %c0_4, %c0_5, %c0_6] : memref<1x1x8x32xf32, #tpu.memory_space<vmem>>, vector<1x1x8x32xf32>
    %3 = vector.shape_cast %2 : vector<1x1x8x32xf32> to vector<8x32xf32>
    %cst = arith.constant dense<0.000000e+00> : vector<8x8xf32>
    %4 = tpu.matmul %1, %3, %cst {dimension_numbers = #tpu.dot_dimension_numbers<[1], [1], [0], [0], [0, 0, 1, 0], [], []>} : vector<8x32xf32>, vector<8x32xf32>, vector<8x8xf32> -> vector<8x8xf32>
    %c0_7 = arith.constant 0 : index
    %c0_8 = arith.constant 0 : index
    %5 = vector.load %arg5[%c0_7, %c0_8] : memref<8x8xbf16, #tpu.memory_space<vmem>>, vector<8x8xbf16>
    %6 = arith.extf %5 : vector<8x8xbf16> to vector<8x8xf32>
    %cst_9 = arith.constant 0.000000e+00 : f32
    %7 = vector.broadcast %cst_9 : f32 to vector<8x8xf32>
    %8 = arith.cmpf ogt, %6, %7 : vector<8x8xf32>
    %cst_10 = arith.constant 0xFF800000 : f32
    %9 = vector.broadcast %cst_10 : f32 to vector<8x8xf32>
    %10 = arith.select %8, %4, %9 : vector<8x8xi1>, vector<8x8xf32>
    %cst_11 = arith.constant dense<0xFF800000> : vector<8xf32>
    %11 = vector.multi_reduction <maximumf>, %10, %cst_11 [1] : vector<8x8xf32> to vector<8xf32>
    %12 = vector.shape_cast %11 : vector<8xf32> to vector<8x1xf32>
    %13 = arith.mulf %4, %6 : vector<8x8xf32>
    %cst_12 = arith.constant dense<0.000000e+00> : vector<8xf32>
    %14 = vector.multi_reduction <add>, %13, %cst_12 [1] : vector<8x8xf32> to vector<8xf32>
    %15 = vector.shape_cast %14 : vector<8xf32> to vector<8x1xf32>
    %cst_13 = arith.constant 1.250000e-01 : f32
    %16 = vector.broadcast %cst_13 : f32 to vector<8x1xf32>
    %17 = arith.mulf %15, %16 : vector<8x1xf32>
    %18 = arith.subf %12, %17 : vector<8x1xf32>
    %c0_14 = arith.constant 0 : index
    %c0_15 = arith.constant 0 : index
    %c0_16 = arith.constant 0 : index
    %c0_17 = arith.constant 0 : index
    %19 = vector.load %arg6[%c0_14, %c0_15, %c0_16, %c0_17] : memref<1x1x8x1xf32, #tpu.memory_space<vmem>>, vector<1x1x8x1xf32>
    %20 = vector.shape_cast %19 : vector<1x1x8x1xf32> to vector<8x1xf32>
    %21 = vector.shape_cast %18 : vector<8x1xf32> to vector<1x1x8x1xf32>
    tpu.vector_store %arg6[%c0_14, %c0_15, %c0_16, %c0_17], %21 {strides = array<i32>} : memref<1x1x8x1xf32, #tpu.memory_space<vmem>>, vector<1x1x8x1xf32>,
    return
  }
  func.func @transform_0(%arg0: i32, %arg1: i32, %arg2: i32) -> (i32, i32, i32, i32) {
    %c0_i32 = arith.constant 0 : i32
    %c0_i32_0 = arith.constant 0 : i32
    return %arg0, %arg1, %arg2, %c0_i32 : i32, i32, i32, i32
  }
  func.func @transform_1(%arg0: i32, %arg1: i32, %arg2: i32) -> (i32, i32, i32, i32) {
    %c0_i32 = arith.constant 0 : i32
    %c0_i32_0 = arith.constant 0 : i32
    %c0_i32_1 = arith.constant 0 : i32
    return %arg0, %arg1, %c0_i32, %c0_i32_0 : i32, i32, i32, i32
  }
  func.func @transform_2(%arg0: i32, %arg1: i32, %arg2: i32) -> (i32, i32) {
    %c0_i32 = arith.constant 0 : i32
    %c0_i32_0 = arith.constant 0 : i32
    return %arg2, %c0_i32 : i32, i32
  }
  func.func @transform_3(%arg0: i32, %arg1: i32, %arg2: i32) -> (i32, i32, i32, i32) {
    %c0_i32 = arith.constant 0 : i32
    %c0_i32_0 = arith.constant 0 : i32
    return %arg0, %arg1, %arg2, %c0_i32 : i32, i32, i32, i32
  }
}

</mosaic_0001>

<llo_original>
// kernel: tpu_custom_call.1
$region0: #{tpu_custom_call.1}
  #allocation0 [shape = 'u32[]', space=smem, size = 0x4, offset = 0x4, fixed_abs, tag = 'smem constant byte address 0x4 - core index']
  #allocation1 [shape = 'u32[144,128]{1,0:T(1,128)}', space=vmem, size = 0x12000, scoped, tag = 'internal scratch']
  %s0 = inlined_call_operand.hbm [shape: f32[2,4,8,32], index: 0, kind: input, shape index: {}]
  %s1 = inlined_call_operand.hbm [shape: f32[2,4,8,32], index: 1, kind: input, shape index: {}]
  %s2 = inlined_call_operand.hbm [shape: bf16[8,8], index: 2, kind: input, shape index: {}]
  %s3 = inlined_call_operand.vmem [shape: f32[2,4,8,1], index: 3, kind: output, shape index: {}]
  %s4 = sld [smem:[#allocation0]]
  $region57: #{tpu_custom_call.1} parent=0
    _
  %s6 = ssub.s32 1, %s4
  %s7 = scalar_select 0, %s6, %s4
  $region1: #{tpu_custom_call.1} parent=0
    #allocation2 [shape = 'u8[8192]{0}', space=vmem, size = 0x2000, scoped, tag = 'input window, operand 0']
    #allocation3 [shape = 's32[2]{0}', space=sflag, size = 0x8, scoped, tag = 'scoped memory for tpu_custom_call.1']
    #allocation4 [shape = 'u8[8192]{0}', space=vmem, size = 0x2000, scoped, tag = 'input window, operand 1']
    #allocation5 [shape = 's32[2]{0}', space=sflag, size = 0x8, scoped, tag = 'scoped memory for tpu_custom_call.1']
    #allocation6 [shape = 'u8[2048]{0}', space=vmem, size = 0x800, scoped, tag = 'input window, operand 2, single buffered']
    %8 = vsyncpa [#allocation3], 0
    %s9 = scalar_lea.sflag [#allocation3], 1
    %10 = vsyncpa %s9, 0
    %11 = vsyncpa [#allocation5], 0
    %s12 = scalar_lea.sflag [#allocation5], 1
    %13 = vsyncpa %s12, 0
    loop: start=0, step=1, limit=10
    $region2: #{tpu_custom_call.1} parent=1 // loop_pre_header
      _
    $region3: #{tpu_custom_call.1} parent=1 // loop_header
      %s15 = sphi 0, %s19
      %p16 = scmp.ge.s32.totalorder %s15, 10
      %s22 = sphi 0, %s41
      %s23 = sphi 0, %s37
      %s24 = sphi 0, %s33
      %s25 = sphi 0, %s22
      %s26 = sphi 0, %s23
      %s27 = sphi 0, %s24
      %s28 = sphi 0, %s25
      %s29 = sphi 0, %s26
      %s30 = sphi 0, %s27
      %s48 = sphi 0, %s50
      %s51 = sphi 0, %s48
      %s52 = sphi 0, %s51
      %s68 = sphi 0, %s52
      %s76 = sphi 0, %s78
      %s79 = sphi 0, %s76
      %s80 = sphi 0, %s79
      %s96 = sphi 0, %s80
      %s102 = sphi 0, %s104
      %s105 = sphi 0, %s102
      %s106 = sphi 0, %s105
      %s122 = sphi 0, %s106
      %s132 = sphi 0, %s134
      %s135 = sphi 0, %s132
      %s136 = sphi 0, %s135
      %s152 = sphi 0, %s136
    $region4: #{tpu_custom_call.1} parent=1 // loop_header_branch
      %18 = sbr.rel (%p16) target = $region8
    $region5: #{tpu_custom_call.1} parent=1 // loop_body
      %s20 = ssub.s32 %s15, 1
      %s21 = ssub.s32 %s15, 2
      %s31 = sadd.s32 1, %s24
      %p32 = scmp.ge.s32.totalorder %s31, 1
      %s33 = scalar_select %p32, 0, %s31
      %s34 = sadd.s32 1, %s23
      %s35 = scalar_select %p32, %s34, %s23
      %p36 = scmp.ge.s32.totalorder %s35, 4
      %s37 = scalar_select %p36, 0, %s35
      %s38 = sadd.s32 1, %s22
      %s39 = scalar_select %p36, %s38, %s22
      %p40 = scmp.ge.s32.totalorder %s39, 2
      %s41 = scalar_select %p40, 0, %s39
      %s42 = ssub.s32 %s22, %s41
      %s43 = ssub.s32 %s23, %s37
      %s44 = sor.u32 %s42, %s43
      %s45 = ssub.s32 %s24, %s33
      %s46 = sor.u32 %s44, %s45
      %p47 = scmp.eq.s32.totalorder %s46, 0
      %s49 = sadd.s32 %s48, 1
      %s50 = scalar_select %p47, %s48, %s49
      %p53 = pneg %p47
      %p54 = scmp.eq.s32.totalorder %s15, 7
      %p55 = por %p53, %p54
      %p56 = scmp.ne.s32.totalorder %s48, %s51
      %p57 = scmp.eq.s32.totalorder %s15, 0
      %p58 = por %p56, %p57
      %p59 = scmp.ne.s32.totalorder %s48, %s51
      %p60 = scmp.eq.s32.totalorder %s20, 7
      %p61 = por %p59, %p60
      %p62 = scmp.ne.s32.totalorder %s51, %s52
      %p63 = scmp.eq.s32.totalorder %s20, 0
      %p64 = por %p62, %p63
      %p65 = scmp.ne.s32.totalorder %s51, %s52
      %p66 = scmp.eq.s32.totalorder %s21, 7
      %p67 = por %p65, %p66
      %p69 = scmp.ne.s32.totalorder %s52, %s68
      %p70 = scmp.eq.s32.totalorder %s21, 0
      %p71 = por %p69, %p70
      %s72 = ssub.s32 %s22, %s41
      %s73 = ssub.s32 %s23, %s37
      %s74 = sor.u32 %s72, %s73
      %p75 = scmp.eq.s32.totalorder %s74, 0
      %s77 = sadd.s32 %s76, 1
      %s78 = scalar_select %p75, %s76, %s77
      %p81 = pneg %p75
      %p82 = scmp.eq.s32.totalorder %s15, 7
      %p83 = por %p81, %p82
      %p84 = scmp.ne.s32.totalorder %s76, %s79
      %p85 = scmp.eq.s32.totalorder %s15, 0
      %p86 = por %p84, %p85
      %p87 = scmp.ne.s32.totalorder %s76, %s79
      %p88 = scmp.eq.s32.totalorder %s20, 7
      %p89 = por %p87, %p88
      %p90 = scmp.ne.s32.totalorder %s79, %s80
      %p91 = scmp.eq.s32.totalorder %s20, 0
      %p92 = por %p90, %p91
      %p93 = scmp.ne.s32.totalorder %s79, %s80
      %p94 = scmp.eq.s32.totalorder %s21, 7
      %p95 = por %p93, %p94
      %p97 = scmp.ne.s32.totalorder %s80, %s96
      %p98 = scmp.eq.s32.totalorder %s21, 0
      %p99 = por %p97, %p98
      %s100 = ssub.s32 %s24, %s33
      %p101 = scmp.eq.s32.totalorder %s100, 0
      %s103 = sadd.s32 %s102, 1
      %s104 = scalar_select %p101, %s102, %s103
      %p107 = pneg %p101
      %p108 = scmp.eq.s32.totalorder %s15, 7
      %p109 = por %p107, %p108
      %p110 = scmp.ne.s32.totalorder %s102, %s105
      %p111 = scmp.eq.s32.totalorder %s15, 0
      %p112 = por %p110, %p111
      %p113 = scmp.ne.s32.totalorder %s102, %s105
      %p114 = scmp.eq.s32.totalorder %s20, 7
      %p115 = por %p113, %p114
      %p116 = scmp.ne.s32.totalorder %s105, %s106
      %p117 = scmp.eq.s32.totalorder %s20, 0
      %p118 = por %p116, %p117
      %p119 = scmp.ne.s32.totalorder %s105, %s106
      %p120 = scmp.eq.s32.totalorder %s21, 7
      %p121 = por %p119, %p120
      %p123 = scmp.ne.s32.totalorder %s106, %s122
      %p124 = scmp.eq.s32.totalorder %s21, 0
      %p125 = por %p123, %p124
      %s126 = ssub.s32 %s22, %s41
      %s127 = ssub.s32 %s23, %s37
      %s128 = sor.u32 %s126, %s127
      %s129 = ssub.s32 %s24, %s33
      %s130 = sor.u32 %s128, %s129
      %p131 = scmp.eq.s32.totalorder %s130, 0
      %s133 = sadd.s32 %s132, 1
      %s134 = scalar_select %p131, %s132, %s133
      %p137 = pneg %p131
      %p138 = scmp.eq.s32.totalorder %s15, 7
      %p139 = por %p137, %p138
      %p140 = scmp.ne.s32.totalorder %s132, %s135
      %p141 = scmp.eq.s32.totalorder %s15, 0
      %p142 = por %p140, %p141
      %p143 = scmp.ne.s32.totalorder %s132, %s135
      %p144 = scmp.eq.s32.totalorder %s20, 7
      %p145 = por %p143, %p144
      %p146 = scmp.ne.s32.totalorder %s135, %s136
      %p147 = scmp.eq.s32.totalorder %s20, 0
      %p148 = por %p146, %p147
      %p149 = scmp.ne.s32.totalorder %s135, %s136
      %p150 = scmp.eq.s32.totalorder %s21, 7
      %p151 = por %p149, %p150
      %p153 = scmp.ne.s32.totalorder %s136, %s152
      %p154 = scmp.eq.s32.totalorder %s21, 0
      %p155 = por %p153, %p154
      %p156 = scmp.le.s32.totalorder 1, %s15
      %p157 = scmp.lt.s32.totalorder %s15, 9
      %p158 = pnand %p156, %p157
      %p159 = pneg %p158
      // Predicated region
      $region9: #{tpu_custom_call.1} parent=5 // pred_check
        _
      $region10: #{tpu_custom_call.1} parent=5 // pred_check_branch
        %161 = sbr.rel (%p158) target = $region12
      $region11: #{tpu_custom_call.1} parent=5 // pred_region
        %s162 = ssub.s32 %s15, 1
        // Predicated region
        $region13: #{tpu_custom_call.1} parent=11 // pred_check
          %p163 = pneg %p118
        $region14: #{tpu_custom_call.1} parent=11 // pred_check_branch
          %165 = sbr.rel (%p163) target = $region16
        $region15: #{tpu_custom_call.1} parent=11 // pred_region
          %s167 = ssub.s32 64, 64
          %168 = vsyncadd [#allocation5], %s167
          %s169 = smul.addr %s27, 64
          %s170 = scalar_lea.hbm %s2, %s169
          %s172 = sshll.u32 [#allocation6], 4
          %s173 = int_to_ptr.vmem [resolvable:$true] %s172
          %175 = dma.hbm_to_vmem [thread:$0]  %s170, 64, %s173, [#allocation5]
        $region16: #{tpu_custom_call.1} parent=11 // pred_fallthru
          _
      $region12: #{tpu_custom_call.1} parent=5 // pred_fallthru
        _
      %p176 = scmp.lt.s32.totalorder %s15, 8
      // Predicated region
      $region17: #{tpu_custom_call.1} parent=5 // pred_check
        %p177 = pneg %p176
      $region18: #{tpu_custom_call.1} parent=5 // pred_check_branch
        %179 = sbr.rel (%p177) target = $region20
      $region19: #{tpu_custom_call.1} parent=5 // pred_region
        // Predicated region
        $region21: #{tpu_custom_call.1} parent=19 // pred_check
          %p180 = pneg %p58
        $region22: #{tpu_custom_call.1} parent=19 // pred_check_branch
          %182 = sbr.rel (%p180) target = $region24
        $region23: #{tpu_custom_call.1} parent=19 // pred_region
          %s183 = sand.u32 %s48, 1
          %s184 = scalar_lea.sflag [#allocation3], %s183
          %s185 = sand.u32 %s48, 1
          %s186 = smul.addr %s185, 8
          %s187 = scalar_lea.vmem [#allocation2], %s186
          %s189 = ssub.s32 128, 128
          %190 = vsyncadd %s184, %s189
          %s191 = sadd.s32 %s24, %s23
          %s192 = smul.addr %s22, 4
          %s193 = sadd.s32 %s191, %s192
          %s194 = smul.addr %s193, 128
          %s195 = scalar_lea.hbm %s0, %s194
          %s197 = sshll.u32 %s187, 4
          %s198 = int_to_ptr.vmem [resolvable:$true] %s197
          %200 = dma.hbm_to_vmem [thread:$0]  %s195, 128, %s198, %s184
        $region24: #{tpu_custom_call.1} parent=19 // pred_fallthru
          _
        // Predicated region
        $region25: #{tpu_custom_call.1} parent=19 // pred_check
          %p201 = pneg %p86
        $region26: #{tpu_custom_call.1} parent=19 // pred_check_branch
          %203 = sbr.rel (%p201) target = $region28
        $region27: #{tpu_custom_call.1} parent=19 // pred_region
          %s204 = sand.u32 %s15, 1
          %s205 = scalar_lea.sflag [#allocation5], %s204
          %s206 = sand.u32 %s76, 1
          %s207 = smul.addr %s206, 8
          %s208 = scalar_lea.vmem [#allocation4], %s207
          %s210 = ssub.s32 128, 128
          %211 = vsyncadd %s205, %s210
          %s212 = smul.addr %s22, 4
          %s213 = sadd.s32 %s23, %s212
          %s214 = smul.addr %s213, 128
          %s215 = scalar_lea.hbm %s1, %s214
          %s217 = sshll.u32 %s208, 4
          %s218 = int_to_ptr.vmem [resolvable:$true] %s217
          %220 = dma.hbm_to_vmem [thread:$0]  %s215, 128, %s218, %s205
        $region28: #{tpu_custom_call.1} parent=19 // pred_fallthru
          _
      $region20: #{tpu_custom_call.1} parent=5 // pred_fallthru
        _
      %p221 = scmp.le.s32.totalorder 1, %s15
      %p222 = scmp.lt.s32.totalorder %s15, 9
      %p223 = pnand %p221, %p222
      %p224 = pneg %p223
      // Predicated region
      $region29: #{tpu_custom_call.1} parent=5 // pred_check
        _
      $region30: #{tpu_custom_call.1} parent=5 // pred_check_branch
        %226 = sbr.rel (%p223) target = $region32
      $region31: #{tpu_custom_call.1} parent=5 // pred_region
        %s227 = ssub.s32 %s15, 1
        %s228 = sand.u32 %s51, 1
        %s229 = scalar_lea.sflag [#allocation3], %s228
        %s230 = sand.u32 %s51, 1
        %s231 = smul.addr %s230, 8
        %s232 = scalar_lea.vmem [#allocation2], %s231
        // Predicated region
        $region33: #{tpu_custom_call.1} parent=31 // pred_check
          %p233 = pneg %p64
        $region34: #{tpu_custom_call.1} parent=31 // pred_check_branch
          %235 = sbr.rel (%p233) target = $region36
        $region35: #{tpu_custom_call.1} parent=31 // pred_region
          %236 = dma.done %s229, 128
        $region36: #{tpu_custom_call.1} parent=31 // pred_fallthru
          _
        %s237 = sand.u32 %s20, 1
        %s238 = scalar_lea.sflag [#allocation5], %s237
        %s239 = sand.u32 %s79, 1
        %s240 = smul.addr %s239, 8
        %s241 = scalar_lea.vmem [#allocation4], %s240
        // Predicated region
        $region37: #{tpu_custom_call.1} parent=31 // pred_check
          %p242 = pneg %p92
        $region38: #{tpu_custom_call.1} parent=31 // pred_check_branch
          %244 = sbr.rel (%p242) target = $region40
        $region39: #{tpu_custom_call.1} parent=31 // pred_region
          %245 = dma.done %s238, 128
        $region40: #{tpu_custom_call.1} parent=31 // pred_fallthru
          _
        // Predicated region
        $region41: #{tpu_custom_call.1} parent=31 // pred_check
          %p246 = pneg %p118
        $region42: #{tpu_custom_call.1} parent=31 // pred_check_branch
          %248 = sbr.rel (%p246) target = $region44
        $region43: #{tpu_custom_call.1} parent=31 // pred_region
          %249 = dma.done [#allocation5], 64
        $region44: #{tpu_custom_call.1} parent=31 // pred_fallthru
          _
        %s250 = sand.u32 %s51, 1
        %s251 = scalar_lea.sflag [#allocation3], %s250
        %s252 = sand.u32 %s51, 1
        %s253 = smul.addr %s252, 8
        %s254 = scalar_lea.vmem [#allocation2], %s253
        %p255 = pneg %p64
        %p256 = pneg %p61
        %s257 = sand.u32 %s20, 1
        %s258 = scalar_lea.sflag [#allocation5], %s257
        %s259 = sand.u32 %s79, 1
        %s260 = smul.addr %s259, 8
        %s261 = scalar_lea.vmem [#allocation4], %s260
        %p262 = pneg %p92
        %p263 = pneg %p89
        %p264 = pneg %p118
        %p265 = pneg %p115
        %p266 = pneg %p148
        %p267 = pneg %p145
        %p268 = scmp.lt.s32.totalorder %s25, 1
        %s269 = scalar_select %p268, %s25, 1
        %p270 = scmp.lt.s32.totalorder %s26, 3
        %s271 = scalar_select %p270, %s26, 3
        %p272 = scmp.lt.s32.totalorder %s27, 0
        %s273 = scalar_select %p272, %s27, 0
        %s274 = sadd.s32 %s273, %s271
        %s275 = smul.addr %s269, 4
        %s276 = sadd.s32 %s274, %s275
        %s277 = smul.addr %s276, 8
        %s278 = scalar_lea.vmem %s3, %s277
        %p279 = scmp.lt.s32.totalorder %s25, 1
        %s280 = scalar_select %p279, %s25, 1
        %p281 = scmp.lt.s32.totalorder %s26, 3
        %s282 = scalar_select %p281, %s26, 3
        %p283 = scmp.lt.s32.totalorder %s27, 0
        %s284 = scalar_select %p283, %s27, 0
        %s285 = sadd.s32 %s284, %s282
        %s286 = smul.addr %s280, 4
        %s287 = sadd.s32 %s285, %s286
        %s288 = smul.addr %s287, 8
        %s289 = scalar_lea.vmem %s3, %s288
        %v290 = vld [vmem:[%s232] sm:$0xff]
        %v291 = vld [vmem:[%s241] sm:$0xff]
        %vm292 = vcmask 261120
        %v294 = vsel %vm292, %v290, 0
        %v297 = vsel %vm292, %v291, 0
        %299 = vmatprep.subr.mxu0 0.0
        %300 = vmatpush1.xpose.msra.mxu0 0.0
        %301 = vmatprep.subr.mxu0 0.0
        %302 = vmatpush1.xpose.msra.mxu0 0.0
        %303 = vmatprep.subr.mxu0 0.0
        %304 = vmatpush1.xpose.msra.mxu0 0.0
        %305 = vmatprep.subr.mxu0 0.0
        %306 = vmatpush1.xpose.msra.mxu0 0.0
        %307 = vmatprep.subr.mxu0 0.0
        %308 = vmatpush1.xpose.msra.mxu0 0.0
        %309 = vmatprep.subr.mxu0 0.0
        %310 = vmatpush1.xpose.msra.mxu0 0.0
        %311 = vmatprep.subr.mxu0 0.0
        %312 = vmatpush1.xpose.msra.mxu0 0.0
        %313 = vmatprep.subr.mxu0 0.0
        %314 = vmatpush1.xpose.msra.mxu0 0.0
        %315 = vmatprep.subr.mxu0 0.0
        %316 = vmatpush1.xpose.msra.mxu0 0.0
        %317 = vmatprep.subr.mxu0 0.0
        %318 = vmatpush1.xpose.msra.mxu0 0.0
        %319 = vmatprep.subr.mxu0 0.0
        %320 = vmatpush1.xpose.msra.mxu0 0.0
        %321 = vmatprep.subr.mxu0 0.0
        %322 = vmatpush1.xpose.msra.mxu0 0.0
        %323 = vmatprep.subr.mxu0 0.0
        %324 = vmatpush1.xpose.msra.mxu0 0.0
        %325 = vmatprep.subr.mxu0 0.0
        %326 = vmatpush1.xpose.msra.mxu0 0.0
        %327 = vmatprep.subr.mxu0 0.0
        %328 = vmatpush1.xpose.msra.mxu0 0.0
        %329 = vmatprep.subr.mxu0 0.0
        %330 = vmatpush1.xpose.msra.mxu0 %v297
        %331 = vmatprep.subr.mxu0 0.0
        %332 = vmatpush2.xpose.msra.mxu0 0.0
        %333 = vmatprep.subr.mxu0 0.0
        %334 = vmatpush2.xpose.msra.mxu0 0.0
        %335 = vmatprep.subr.mxu0 0.0
        %336 = vmatpush2.xpose.msra.mxu0 0.0
        %337 = vmatprep.subr.mxu0 0.0
        %338 = vmatpush2.xpose.msra.mxu0 0.0
        %339 = vmatprep.subr.mxu0 0.0
        %340 = vmatpush2.xpose.msra.mxu0 0.0
        %341 = vmatprep.subr.mxu0 0.0
        %342 = vmatpush2.xpose.msra.mxu0 0.0
        %343 = vmatprep.subr.mxu0 0.0
        %344 = vmatpush2.xpose.msra.mxu0 0.0
        %345 = vmatprep.subr.mxu0 0.0
        %346 = vmatpush2.xpose.msra.mxu0 0.0
        %347 = vmatprep.subr.mxu0 0.0
        %348 = vmatpush2.xpose.msra.mxu0 0.0
        %349 = vmatprep.subr.mxu0 0.0
        %350 = vmatpush2.xpose.msra.mxu0 0.0
        %351 = vmatprep.subr.mxu0 0.0
        %352 = vmatpush2.xpose.msra.mxu0 0.0
        %353 = vmatprep.subr.mxu0 0.0
        %354 = vmatpush2.xpose.msra.mxu0 0.0
        %355 = vmatprep.subr.mxu0 0.0
        %356 = vmatpush2.xpose.msra.mxu0 0.0
        %357 = vmatprep.subr.mxu0 0.0
        %358 = vmatpush2.xpose.msra.mxu0 0.0
        %359 = vmatprep.subr.mxu0 0.0
        %360 = vmatpush2.xpose.msra.mxu0 0.0
        %361 = vmatprep.subr.mxu0 0.0
        %362 = vmatpush2.xpose.msra.mxu0 0.0
        %363 = vmatprep.mubr.f32.mxu0 0.0
        %364 = vmatmul.mubr.f32.gmra.mxu0 %v294
        %v365 = vpop.f32.mrf.mxu0
        %v366 = vadd.f32 0.0, %v365
        %v367 = vpop.f32.mrf.mxu0
        %368 = vdwg.mxu0
        %v369 = vld [vmem:[#allocation6] sm:$0xf]
        %v370 = vunpack.c.l.bf16 %v369
        %vm371 = vcmp.gt.f32.partialorder %v370, 0.0
        %v372 = vsel %vm371, %v366, -inf
        %vm373 = vcmask 64512
        %v374 = vsel %vm373, %v372, -inf
        %375 = vmax.xlane.f32.xlu0 %v374
        %v376 = vpop.xlane.xlu0 %375
        %v377 = vmul.f32 %v366, %v370
        %v378 = vsel %vm373, %v377, 0.0
        %379 = vadd.xlane.f32.xlu0 %v378
        %v380 = vpop.xlane.xlu0 %379
        %v381 = vmul.f32 %v380, 0.125
        %v382 = vsub.f32 %v376, %v381
        %vm383 = vcmask 7168
        %384 = vst.msk [vmem:[%s289] sm:$0xff] %vm383, %v382
        %p385 = scmp.lt.s32.totalorder %s25, 1
        %s386 = scalar_select %p385, %s25, 1
        %p387 = scmp.lt.s32.totalorder %s26, 3
        %s388 = scalar_select %p387, %s26, 3
        %p389 = scmp.lt.s32.totalorder %s27, 0
        %s390 = scalar_select %p389, %s27, 0
        %s391 = sadd.s32 %s390, %s388
        %s392 = smul.addr %s386, 4
        %s393 = sadd.s32 %s391, %s392
        %s394 = smul.addr %s393, 8
        %s395 = scalar_lea.vmem %s3, %s394
        // Predicated region
        $region45: #{tpu_custom_call.1} parent=31 // pred_check
          %p396 = pneg %p145
        $region46: #{tpu_custom_call.1} parent=31 // pred_check_branch
          %398 = sbr.rel (%p396) target = $region48
        $region47: #{tpu_custom_call.1} parent=31 // pred_region
          _
        $region48: #{tpu_custom_call.1} parent=31 // pred_fallthru
          _
      $region32: #{tpu_custom_call.1} parent=5 // pred_fallthru
        _
      %p399 = scmp.le.s32.totalorder 2, %s15
      // Predicated region
      $region49: #{tpu_custom_call.1} parent=5 // pred_check
        %p400 = pneg %p399
      $region50: #{tpu_custom_call.1} parent=5 // pred_check_branch
        %402 = sbr.rel (%p400) target = $region52
      $region51: #{tpu_custom_call.1} parent=5 // pred_region
        %s403 = ssub.s32 %s15, 2
        // Predicated region
        $region53: #{tpu_custom_call.1} parent=51 // pred_check
          %p404 = pneg %p151
        $region54: #{tpu_custom_call.1} parent=51 // pred_check_branch
          %406 = sbr.rel (%p404) target = $region56
        $region55: #{tpu_custom_call.1} parent=51 // pred_region
          %p407 = scmp.lt.s32.totalorder %s28, 1
          %s408 = scalar_select %p407, %s28, 1
          %p409 = scmp.lt.s32.totalorder %s29, 3
          %s410 = scalar_select %p409, %s29, 3
          %p411 = scmp.lt.s32.totalorder %s30, 0
          %s412 = scalar_select %p411, %s30, 0
          %s413 = sadd.s32 %s412, %s410
          %s414 = smul.addr %s408, 4
          %s415 = sadd.s32 %s413, %s414
          %s416 = smul.addr %s415, 8
          %s417 = scalar_lea.vmem %s3, %s416
        $region56: #{tpu_custom_call.1} parent=51 // pred_fallthru
          _
      $region52: #{tpu_custom_call.1} parent=5 // pred_fallthru
        _
    $region6: #{tpu_custom_call.1} parent=1 // loop_footer
      %s19 = sadd.s32 1, %s15
    $region7: #{tpu_custom_call.1} parent=1 // loop_footer_branch
      %14 = sbr.rel target = $region3
    $region8: #{tpu_custom_call.1} parent=1 // loop_exit
      _
    %418 = vsyncpa [#allocation3], 1
    %s419 = scalar_lea.sflag [#allocation3], 1
    %420 = vsyncpa %s419, 1
    %421 = vsyncpa [#allocation5], 1
    %s422 = scalar_lea.sflag [#allocation5], 1
    %423 = vsyncpa %s422, 1

</llo_original>
